<compile_context>
chip_gen: v5e
topology: v5e:2x2
jax: 0.10.0
libtpu: 0.0.40
codegen_flags: <defaults>
</compile_context>

<pallas_src>
import functools

import jax
import jax.numpy as jnp
from jax.experimental import pallas as pl
from jax.experimental.pallas import tpu as pltpu

BN_EPS = 1e-5
LANE = 128   # TPU lane width
SUB = 16     # sublane granularity for bf16-packed row tiles


def _round_up(v, m):
    return ((v + m - 1) // m) * m


def _pad2(a, rows, cols, dtype):
    """Zero-pad a 2-D array to (rows, cols) and cast."""
    out = jnp.zeros((rows, cols), dtype)
    return out.at[: a.shape[0], : a.shape[1]].set(a.astype(dtype))


# ----------------------------- degree (wrapper side) --------------------------

def compute_deg(edge_index, num_nodes, dtype=jnp.float32):
    """deg[i] = 1 (self loop from eye) + #distinct j != i with an (i, j) edge.

    Dedup ("set" semantics of A[i,j] = 1) via a lexicographic sort of
    (src, dst) — no packed src*n+dst key, so no int32 overflow for n > 46340 —
    followed by a sorted segment-sum.  For a static graph call this once and
    pass deg= to gcn_raw_forward.
    """
    src = edge_index[0].astype(jnp.int32)
    dst = edge_index[1].astype(jnp.int32)
    order = jnp.lexsort((dst, src))          # primary key src, secondary dst
    s = src[order]
    d = dst[order]
    is_first = jnp.concatenate(
        [jnp.ones((1,), jnp.bool_), (s[1:] != s[:-1]) | (d[1:] != d[:-1])])
    contributes = (is_first & (s != d)).astype(dtype)   # self loops already in eye()
    deg = 1.0 + jax.ops.segment_sum(
        contributes, s, num_segments=num_nodes, indices_are_sorted=True)
    return deg.astype(dtype)


# ----------------------------- fused Pallas kernel ----------------------------

def _fused_gcn_kernel(n_conv, n_fc, n_out, *refs):
    """Whole GCNraw forward for one row-tile of nodes.

    refs layout:
      x_ref   [tile_n, f_in]        bf16
      deg_ref [tile_n, 1]           f32
      per conv layer: w [Kp, Fp] bf16, bss [8, Fp] f32 (rows 0/1/2 = bias/scale/shift)
      per fc layer:   w [Kp, Fp] bf16, b   [1, Fp] f32
      out_ref [tile_n, n_out]       f32   (unpadded class dim)
    Padded weight rows/cols and bias/scale/shift columns are zero, so padded
    feature columns stay exactly zero through every layer.
    """
    x_ref, deg_ref = refs[0], refs[1]
    idx = 2

    h = x_ref[...].astype(jnp.float32)        # exact bf16 -> f32 upcast
    deg = deg_ref[...]                        # [tile_n, 1] f32

    for _ in range(n_conv):
        w_ref, bss_ref = refs[idx], refs[idx + 1]
        idx += 2
        bss = bss_ref[...]                    # [8, Fp] f32
        # (D*A*D) @ x == deg ⊙ x  (faithful reproduction of the elementwise bug)
        hs = (deg * h).astype(jnp.bfloat16)
        y = jnp.dot(hs, w_ref[...], preferred_element_type=jnp.float32) + bss[0:1]
        y = jnp.maximum(y, 0.0)               # ReLU
        h = y * bss[1:2] + bss[2:3]           # folded BatchNorm1d (eval running stats)
        # Dropout (eval) == identity

    for _ in range(n_fc):
        w_ref, b_ref = refs[idx], refs[idx + 1]
        idx += 2
        y = jnp.dot(h.astype(jnp.bfloat16), w_ref[...],
                    preferred_element_type=jnp.float32) + b_ref[...]
        h = jnp.maximum(y, 0.0)               # ReLU; Dropout (eval) == identity

    out_ref = refs[idx]
    out_ref[...] = h[:, :n_out].astype(out_ref.dtype)


# ----------------------------- forward wrapper --------------------------------

def gcn_raw_forward(params, x, edge_index=None, *, deg=None, tile_n_max=1024):
    """x: [N, F] float32, edge_index: [2, E] int32 (or precomputed deg [N]).

    Returns [N, num_classes] float32.
    """
    n, f_in = x.shape
    dtype = jnp.float32
    n_classes = params["fc"][-1]["w"].shape[1]

    if deg is None:
        if edge_index is None:
            raise ValueError("need edge_index or precomputed deg")
        deg = compute_deg(edge_index, n, dtype)

    # ---- row tiling ----------------------------------------------------------
    # tile_n: multiple of 16 (bf16 sublane packing), <= tile_n_max, and <=
    # ceil(n/2) so the grid has >= 2 steps (v7x megacore gets both TCs busy).
    tile_cap = max(SUB, (int(tile_n_max) // SUB) * SUB)
    n_min = _round_up(n, SUB)
    if n_min <= SUB:
        tile_n = n_min
    else:
        tile_n = min(tile_cap, _round_up((n_min + 1) // 2, SUB))
    n_pad = _round_up(n, tile_n)

    # ---- operands ------------------------------------------------------------
    # x: bf16, rows padded only (feature dim stays unpadded -> minimal HBM reads)
    x_p = jnp.zeros((n_pad, f_in), jnp.bfloat16).at[:n].set(x.astype(jnp.bfloat16))
    deg_p = jnp.zeros((n_pad, 1), dtype).at[:n, 0].set(deg)

    flat_args = [x_p, deg_p]
    in_specs = [
        pl.BlockSpec((tile_n, f_in), lambda i: (i, 0)),
        pl.BlockSpec((tile_n, 1), lambda i: (i, 0)),
    ]

    f_prev = f_in                       # current (padded) activation width
    for layer in params["conv"]:
        f_out = layer["w"].shape[1]
        f_out_pad = _round_up(f_out, LANE)
        # fold BatchNorm1d (eval) into scale/shift; pack bias/scale/shift into
        # one [8, Fp] operand (rows 0, 1, 2; rest zero).
        scale = layer["gamma"] * jax.lax.rsqrt(layer["var"] + BN_EPS)
        shift = layer["beta"] - layer["mean"] * scale
        bss = jnp.zeros((8, f_out_pad), dtype)
        bss = bss.at[0, :f_out].set(layer["b"][0])
        bss = bss.at[1, :f_out].set(scale[0])
        bss = bss.at[2, :f_out].set(shift[0])
        flat_args += [_pad2(layer["w"], f_prev, f_out_pad, jnp.bfloat16), bss]
        in_specs += [
            pl.BlockSpec((f_prev, f_out_pad), lambda i: (0, 0)),
            pl.BlockSpec((8, f_out_pad), lambda i: (0, 0)),
        ]
        f_prev = f_out_pad

    for layer in params["fc"]:
        f_out = layer["w"].shape[1]
        f_out_pad = _round_up(f_out, LANE)
        flat_args += [
            _pad2(layer["w"], f_prev, f_out_pad, jnp.bfloat16),
            _pad2(layer["b"], 1, f_out_pad, dtype),
        ]
        in_specs += [
            pl.BlockSpec((f_prev, f_out_pad), lambda i: (0, 0)),
            pl.BlockSpec((1, f_out_pad), lambda i: (0, 0)),
        ]
        f_prev = f_out_pad

    kernel = functools.partial(
        _fused_gcn_kernel, len(params["conv"]), len(params["fc"]), n_classes)

    out_p = pl.pallas_call(
        kernel,
        out_shape=jax.ShapeDtypeStruct((n_pad, n_classes), dtype),
        grid=(n_pad // tile_n,),
        in_specs=in_specs,
        # Unpadded class dim: masked stores, but 16x fewer HBM write bytes than
        # a 128-lane f32 slab.
        out_specs=pl.BlockSpec((tile_n, n_classes), lambda i: (i, 0)),
        compiler_params=pltpu.CompilerParams(
            dimension_semantics=("parallel",)),   # row tiles split across v7x's 2 TCs
    )(*flat_args)

    return out_p[:n]


# ----------------------------- params / references ----------------------------

def init_params(key, num_node_features, conv_layers, fc_layers, num_classes):
    conv_dim = [num_node_features] + list(conv_layers)
    fc_dim = [conv_layers[-1]] + list(fc_layers) + [num_classes]

    params = {"conv": [], "fc": []}
    for d_in, d_out in zip(conv_dim[:-1], conv_dim[1:]):
        key, kw, kb = jax.random.split(key, 3)
        bound = 1.0 / jnp.sqrt(d_in)
        params["conv"].append({
            "w": jax.random.uniform(kw, (d_in, d_out), jnp.float32, -bound, bound),
            "b": jax.random.uniform(kb, (1, d_out), jnp.float32, -bound, bound),
            # BatchNorm1d defaults (eval-mode running stats)
            "gamma": jnp.ones((1, d_out), jnp.float32),
            "beta": jnp.zeros((1, d_out), jnp.float32),
            "mean": jnp.zeros((1, d_out), jnp.float32),
            "var": jnp.ones((1, d_out), jnp.float32),
        })
    for d_in, d_out in zip(fc_dim[:-1], fc_dim[1:]):
        key, kw, kb = jax.random.split(key, 3)
        bound = 1.0 / jnp.sqrt(d_in)
        params["fc"].append({
            "w": jax.random.uniform(kw, (d_in, d_out), jnp.float32, -bound, bound),
            "b": jax.random.uniform(kb, (1, d_out), jnp.float32, -bound, bound),
        })
    return params


def reference_forward(params, x, edge_index):
    """Pure-JAX f32 dense reference matching the PyTorch code literally."""
    n = x.shape[0]
    a = jnp.eye(n, dtype=x.dtype).at[edge_index[0], edge_index[1]].set(1.0)
    d = jnp.sqrt(jnp.diag(jnp.sum(a, axis=1)))
    dad = d * a * d                       # elementwise, as in the PyTorch source
    h = x
    for layer in params["conv"]:
        h = dad @ h
        h = h @ layer["w"] + layer["b"]
        h = jnp.maximum(h, 0.0)
        h = ((h - layer["mean"]) * jax.lax.rsqrt(layer["var"] + BN_EPS)
             * layer["gamma"] + layer["beta"])
    for layer in params["fc"]:
        h = jnp.maximum(h @ layer["w"] + layer["b"], 0.0)
    return h


def emulated_forward(params, x, deg):
    """Pure-JAX replica of the EXACT kernel math (bf16 operands, f32 accum)."""
    f32, bf16 = jnp.float32, jnp.bfloat16
    h = x.astype(bf16).astype(f32)            # x is stored bf16 in HBM
    d = deg.astype(f32)[:, None]
    for layer in params["conv"]:
        scale = layer["gamma"] * jax.lax.rsqrt(layer["var"] + BN_EPS)
        shift = layer["beta"] - layer["mean"] * scale
        hs = (d * h).astype(bf16)
        y = jnp.dot(hs, layer["w"].astype(bf16), preferred_element_type=f32) + layer["b"]
        y = jnp.maximum(y, 0.0)
        h = y * scale + shift
    for layer in params["fc"]:
        y = jnp.dot(h.astype(bf16), layer["w"].astype(bf16),
                    preferred_element_type=f32) + layer["b"]
        h = jnp.maximum(y, 0.0)
    return h


# ----------------------------- main -------------------------------------------

if __name__ == "__main__":
    key = jax.random.PRNGKey(0)

    # Small synthetic "dataset": 64 nodes, 16 input features, 128 edges,
    # conv_layers = [32, 32], fc_layers = [32], num_classes = 8.
    num_nodes = 64
    num_node_features = 16
    num_edges = 128
    conv_layers = [32, 32]
    fc_layers = [32]
    num_classes = 8

    key, kx, ke, kp = jax.random.split(key, 4)
    x = jax.random.normal(kx, (num_nodes, num_node_features), jnp.float32)
    edge_index = jax.random.randint(ke, (2, num_edges), 0, num_nodes, jnp.int32)

    params = init_params(kp, num_node_features, conv_layers, fc_layers, num_classes)

    # Full path: matches the module's forward(x, edge_index) signature.
    fwd = jax.jit(lambda p, xx, ee: gcn_raw_forward(p, xx, ee))
    out = jax.block_until_ready(fwd(params, x, edge_index))

    assert out.shape == (num_nodes, num_classes), out.shape
    assert bool(jnp.all(jnp.isfinite(out)))

    # Static-graph fast path: deg hoisted out of the per-call jit (the sort /
    # segment-sum is the real bottleneck at small graph sizes).
    deg = jax.block_until_ready(compute_deg(edge_index, num_nodes))
    fwd_cached = jax.jit(lambda p, xx, dd: gcn_raw_forward(p, xx, deg=dd))
    out_cached = jax.block_until_ready(fwd_cached(params, x, deg))
    assert float(jnp.max(jnp.abs(out_cached - out))) < 1e-5

    # Tight check: pure-JAX replica of the exact kernel math (bf16 operands,
    # f32 accumulation).  Validates the Pallas tiling / DMA / layout mechanics.
    emu = emulated_forward(params, x, deg)
    scale_emu = float(jnp.maximum(1.0, jnp.max(jnp.abs(emu))))
    err_emu = float(jnp.max(jnp.abs(out - emu)))
    assert err_emu < 1e-3 * scale_emu, (err_emu, scale_emu)

    # Loose check: literal f32 dense reference (eye + elementwise D*A*D); the
    # remaining gap is the expected bf16-operand quantization.
    ref = reference_forward(params, x, edge_index)
    scale_ref = float(jnp.maximum(1.0, jnp.max(jnp.abs(ref))))
    err_ref = float(jnp.max(jnp.abs(out - ref)))
    assert err_ref < 5e-2 * scale_ref, (err_ref, scale_ref)

    print("KERNEL_OK")
</pallas_src>

<mosaic_0001>
module attributes {stable_mosaic.version = 11 : i64} {
  func.func @_fused_gcn_kernel(%arg0: i32, %arg1: memref<32x16xbf16, #tpu.memory_space<vmem>>, %arg2: memref<32x1xf32, #tpu.memory_space<vmem>>, %arg3: memref<16x128xbf16, #tpu.memory_space<vmem>>, %arg4: memref<8x128xf32, #tpu.memory_space<vmem>>, %arg5: memref<128x128xbf16, #tpu.memory_space<vmem>>, %arg6: memref<8x128xf32, #tpu.memory_space<vmem>>, %arg7: memref<128x128xbf16, #tpu.memory_space<vmem>>, %arg8: memref<1x128xf32, #tpu.memory_space<vmem>>, %arg9: memref<128x128xbf16, #tpu.memory_space<vmem>>, %arg10: memref<1x128xf32, #tpu.memory_space<vmem>>, %arg11: memref<32x8xf32, #tpu.memory_space<vmem>>) attributes {dimension_semantics = [#tpu.dimension_semantics<parallel>], iteration_bounds = array<i64: 2>, scalar_prefetch = 0 : i64, scratch_operands = 0 : i64, tpu.core_type = #tpu.core_type<tc>, window_params = [{transform_indices = @transform_0, window_bounds = array<i64: 32, 16>}, {transform_indices = @transform_1, window_bounds = array<i64: 32, 1>}, {pipeline_mode = #tpu.pipeline_mode<synchronous>, transform_indices = @transform_2, window_bounds = array<i64: 16, 128>}, {pipeline_mode = #tpu.pipeline_mode<synchronous>, transform_indices = @transform_3, window_bounds = array<i64: 8, 128>}, {pipeline_mode = #tpu.pipeline_mode<synchronous>, transform_indices = @transform_4, window_bounds = array<i64: 128, 128>}, {pipeline_mode = #tpu.pipeline_mode<synchronous>, transform_indices = @transform_5, window_bounds = array<i64: 8, 128>}, {pipeline_mode = #tpu.pipeline_mode<synchronous>, transform_indices = @transform_6, window_bounds = array<i64: 128, 128>}, {pipeline_mode = #tpu.pipeline_mode<synchronous>, transform_indices = @transform_7, window_bounds = array<i64: 1, 128>}, {pipeline_mode = #tpu.pipeline_mode<synchronous>, transform_indices = @transform_8, window_bounds = array<i64: 128, 128>}, {pipeline_mode = #tpu.pipeline_mode<synchronous>, transform_indices = @transform_9, window_bounds = array<i64: 1, 128>}, {transform_indices = @transform_10, window_bounds = array<i64: 32, 8>}]} {
    %c0 = arith.constant 0 : index
    %c0_0 = arith.constant 0 : index
    %0 = vector.load %arg1[%c0, %c0_0] : memref<32x16xbf16, #tpu.memory_space<vmem>>, vector<32x16xbf16>
    %1 = arith.extf %0 : vector<32x16xbf16> to vector<32x16xf32>
    %c0_1 = arith.constant 0 : index
    %c0_2 = arith.constant 0 : index
    %2 = vector.load %arg2[%c0_1, %c0_2] : memref<32x1xf32, #tpu.memory_space<vmem>>, vector<32x1xf32>
    %c0_3 = arith.constant 0 : index
    %c0_4 = arith.constant 0 : index
    %3 = vector.load %arg4[%c0_3, %c0_4] : memref<8x128xf32, #tpu.memory_space<vmem>>, vector<8x128xf32>
    %4 = vector.broadcast %2 : vector<32x1xf32> to vector<32x16xf32>
    %5 = arith.mulf %4, %1 : vector<32x16xf32>
    %6 = arith.truncf %5 : vector<32x16xf32> to vector<32x16xbf16>
    %c0_5 = arith.constant 0 : index
    %c0_6 = arith.constant 0 : index
    %7 = vector.load %arg3[%c0_5, %c0_6] : memref<16x128xbf16, #tpu.memory_space<vmem>>, vector<16x128xbf16>
    %cst = arith.constant dense<0.000000e+00> : vector<32x128xf32>
    %8 = tpu.matmul %6, %7, %cst {dimension_numbers = #tpu.dot_dimension_numbers<[1], [0], [0], [1], [0, 0, 1, 1], [], []>} : vector<32x16xbf16>, vector<16x128xbf16>, vector<32x128xf32> -> vector<32x128xf32>
    %9 = vector.extract_strided_slice %3 {offsets = [0, 0], sizes = [1, 128], strides = [1, 1]} : vector<8x128xf32> to vector<1x128xf32>
    %10 = vector.broadcast %9 : vector<1x128xf32> to vector<32x128xf32>
    %11 = arith.addf %8, %10 : vector<32x128xf32>
    %cst_7 = arith.constant 0.000000e+00 : f32
    %12 = vector.broadcast %cst_7 : f32 to vector<32x128xf32>
    %13 = arith.maximumf %11, %12 : vector<32x128xf32>
    %14 = vector.extract_strided_slice %3 {offsets = [1, 0], sizes = [1, 128], strides = [1, 1]} : vector<8x128xf32> to vector<1x128xf32>
    %15 = vector.broadcast %14 : vector<1x128xf32> to vector<32x128xf32>
    %16 = arith.mulf %13, %15 : vector<32x128xf32>
    %17 = vector.extract_strided_slice %3 {offsets = [2, 0], sizes = [1, 128], strides = [1, 1]} : vector<8x128xf32> to vector<1x128xf32>
    %18 = vector.broadcast %17 : vector<1x128xf32> to vector<32x128xf32>
    %19 = arith.addf %16, %18 : vector<32x128xf32>
    %c0_8 = arith.constant 0 : index
    %c0_9 = arith.constant 0 : index
    %20 = vector.load %arg6[%c0_8, %c0_9] : memref<8x128xf32, #tpu.memory_space<vmem>>, vector<8x128xf32>
    %21 = vector.broadcast %2 : vector<32x1xf32> to vector<32x128xf32>
    %22 = arith.mulf %21, %19 : vector<32x128xf32>
    %23 = arith.truncf %22 : vector<32x128xf32> to vector<32x128xbf16>
    %c0_10 = arith.constant 0 : index
    %c0_11 = arith.constant 0 : index
    %24 = vector.load %arg5[%c0_10, %c0_11] : memref<128x128xbf16, #tpu.memory_space<vmem>>, vector<128x128xbf16>
    %cst_12 = arith.constant dense<0.000000e+00> : vector<32x128xf32>
    %25 = tpu.matmul %23, %24, %cst_12 {dimension_numbers = #tpu.dot_dimension_numbers<[1], [0], [0], [1], [0, 0, 1, 1], [], []>} : vector<32x128xbf16>, vector<128x128xbf16>, vector<32x128xf32> -> vector<32x128xf32>
    %26 = vector.extract_strided_slice %20 {offsets = [0, 0], sizes = [1, 128], strides = [1, 1]} : vector<8x128xf32> to vector<1x128xf32>
    %27 = vector.broadcast %26 : vector<1x128xf32> to vector<32x128xf32>
    %28 = arith.addf %25, %27 : vector<32x128xf32>
    %cst_13 = arith.constant 0.000000e+00 : f32
    %29 = vector.broadcast %cst_13 : f32 to vector<32x128xf32>
    %30 = arith.maximumf %28, %29 : vector<32x128xf32>
    %31 = vector.extract_strided_slice %20 {offsets = [1, 0], sizes = [1, 128], strides = [1, 1]} : vector<8x128xf32> to vector<1x128xf32>
    %32 = vector.broadcast %31 : vector<1x128xf32> to vector<32x128xf32>
    %33 = arith.mulf %30, %32 : vector<32x128xf32>
    %34 = vector.extract_strided_slice %20 {offsets = [2, 0], sizes = [1, 128], strides = [1, 1]} : vector<8x128xf32> to vector<1x128xf32>
    %35 = vector.broadcast %34 : vector<1x128xf32> to vector<32x128xf32>
    %36 = arith.addf %33, %35 : vector<32x128xf32>
    %37 = arith.truncf %36 : vector<32x128xf32> to vector<32x128xbf16>
    %c0_14 = arith.constant 0 : index
    %c0_15 = arith.constant 0 : index
    %38 = vector.load %arg7[%c0_14, %c0_15] : memref<128x128xbf16, #tpu.memory_space<vmem>>, vector<128x128xbf16>
    %cst_16 = arith.constant dense<0.000000e+00> : vector<32x128xf32>
    %39 = tpu.matmul %37, %38, %cst_16 {dimension_numbers = #tpu.dot_dimension_numbers<[1], [0], [0], [1], [0, 0, 1, 1], [], []>} : vector<32x128xbf16>, vector<128x128xbf16>, vector<32x128xf32> -> vector<32x128xf32>
    %c0_17 = arith.constant 0 : index
    %c0_18 = arith.constant 0 : index
    %40 = vector.load %arg8[%c0_17, %c0_18] : memref<1x128xf32, #tpu.memory_space<vmem>>, vector<1x128xf32>
    %41 = vector.broadcast %40 : vector<1x128xf32> to vector<32x128xf32>
    %42 = arith.addf %39, %41 : vector<32x128xf32>
    %cst_19 = arith.constant 0.000000e+00 : f32
    %43 = vector.broadcast %cst_19 : f32 to vector<32x128xf32>
    %44 = arith.maximumf %42, %43 : vector<32x128xf32>
    %45 = arith.truncf %44 : vector<32x128xf32> to vector<32x128xbf16>
    %c0_20 = arith.constant 0 : index
    %c0_21 = arith.constant 0 : index
    %46 = vector.load %arg9[%c0_20, %c0_21] : memref<128x128xbf16, #tpu.memory_space<vmem>>, vector<128x128xbf16>
    %cst_22 = arith.constant dense<0.000000e+00> : vector<32x128xf32>
    %47 = tpu.matmul %45, %46, %cst_22 {dimension_numbers = #tpu.dot_dimension_numbers<[1], [0], [0], [1], [0, 0, 1, 1], [], []>} : vector<32x128xbf16>, vector<128x128xbf16>, vector<32x128xf32> -> vector<32x128xf32>
    %c0_23 = arith.constant 0 : index
    %c0_24 = arith.constant 0 : index
    %48 = vector.load %arg10[%c0_23, %c0_24] : memref<1x128xf32, #tpu.memory_space<vmem>>, vector<1x128xf32>
    %49 = vector.broadcast %48 : vector<1x128xf32> to vector<32x128xf32>
    %50 = arith.addf %47, %49 : vector<32x128xf32>
    %cst_25 = arith.constant 0.000000e+00 : f32
    %51 = vector.broadcast %cst_25 : f32 to vector<32x128xf32>
    %52 = arith.maximumf %50, %51 : vector<32x128xf32>
    %53 = vector.extract_strided_slice %52 {offsets = [0, 0], sizes = [32, 8], strides = [1, 1]} : vector<32x128xf32> to vector<32x8xf32>
    %c0_26 = arith.constant 0 : index
    %c0_27 = arith.constant 0 : index
    %54 = vector.load %arg11[%c0_26, %c0_27] : memref<32x8xf32, #tpu.memory_space<vmem>>, vector<32x8xf32>
    tpu.vector_store %arg11[%c0_26, %c0_27], %53 {strides = array<i32>} : memref<32x8xf32, #tpu.memory_space<vmem>>, vector<32x8xf32>,
    return
  }
  func.func @transform_0(%arg0: i32) -> (i32, i32) {
    %c0_i32 = arith.constant 0 : i32
    %c0_i32_0 = arith.constant 0 : i32
    return %arg0, %c0_i32 : i32, i32
  }
  func.func @transform_1(%arg0: i32) -> (i32, i32) {
    %c0_i32 = arith.constant 0 : i32
    %c0_i32_0 = arith.constant 0 : i32
    return %arg0, %c0_i32 : i32, i32
  }
  func.func @transform_2(%arg0: i32) -> (i32, i32) {
    %c0_i32 = arith.constant 0 : i32
    %c0_i32_0 = arith.constant 0 : i32
    %c0_i32_1 = arith.constant 0 : i32
    return %c0_i32, %c0_i32_0 : i32, i32
  }
  func.func @transform_3(%arg0: i32) -> (i32, i32) {
    %c0_i32 = arith.constant 0 : i32
    %c0_i32_0 = arith.constant 0 : i32
    %c0_i32_1 = arith.constant 0 : i32
    return %c0_i32, %c0_i32_0 : i32, i32
  }
  func.func @transform_4(%arg0: i32) -> (i32, i32) {
    %c0_i32 = arith.constant 0 : i32
    %c0_i32_0 = arith.constant 0 : i32
    %c0_i32_1 = arith.constant 0 : i32
    return %c0_i32, %c0_i32_0 : i32, i32
  }
  func.func @transform_5(%arg0: i32) -> (i32, i32) {
    %c0_i32 = arith.constant 0 : i32
    %c0_i32_0 = arith.constant 0 : i32
    %c0_i32_1 = arith.constant 0 : i32
    return %c0_i32, %c0_i32_0 : i32, i32
  }
  func.func @transform_6(%arg0: i32) -> (i32, i32) {
    %c0_i32 = arith.constant 0 : i32
    %c0_i32_0 = arith.constant 0 : i32
    %c0_i32_1 = arith.constant 0 : i32
    return %c0_i32, %c0_i32_0 : i32, i32
  }
  func.func @transform_7(%arg0: i32) -> (i32, i32) {
    %c0_i32 = arith.constant 0 : i32
    %c0_i32_0 = arith.constant 0 : i32
    %c0_i32_1 = arith.constant 0 : i32
    return %c0_i32, %c0_i32_0 : i32, i32
  }
  func.func @transform_8(%arg0: i32) -> (i32, i32) {
    %c0_i32 = arith.constant 0 : i32
    %c0_i32_0 = arith.constant 0 : i32
    %c0_i32_1 = arith.constant 0 : i32
    return %c0_i32, %c0_i32_0 : i32, i32
  }
  func.func @transform_9(%arg0: i32) -> (i32, i32) {
    %c0_i32 = arith.constant 0 : i32
    %c0_i32_0 = arith.constant 0 : i32
    %c0_i32_1 = arith.constant 0 : i32
    return %c0_i32, %c0_i32_0 : i32, i32
  }
  func.func @transform_10(%arg0: i32) -> (i32, i32) {
    %c0_i32 = arith.constant 0 : i32
    %c0_i32_0 = arith.constant 0 : i32
    return %arg0, %c0_i32 : i32, i32
  }
}

</mosaic_0001>

<llo_original>
// kernel: _lambda_.1
$region0: #{_lambda_.1}
  #allocation0 [shape = 'u32[]', space=smem, size = 0x4, offset = 0x4, fixed_abs, tag = 'smem constant byte address 0x4 - core index']
  #allocation1 [shape = 'u32[72,128]{1,0:T(1,128)}', space=vmem, size = 0x9000, scoped, tag = 'internal scratch']
  %s0 = inlined_call_operand.vmem [shape: bf16[64,16], index: 0, kind: input, shape index: {}]
  %s1 = inlined_call_operand.vmem [shape: f32[64,1], index: 1, kind: input, shape index: {}]
  %s2 = inlined_call_operand.vmem [shape: bf16[16,128], index: 2, kind: input, shape index: {}]
  %s3 = inlined_call_operand.vmem [shape: f32[8,128], index: 3, kind: input, shape index: {}]
  %s4 = inlined_call_operand.vmem [shape: bf16[128,128], index: 4, kind: input, shape index: {}]
  %s5 = inlined_call_operand.vmem [shape: f32[8,128], index: 5, kind: input, shape index: {}]
  %s6 = inlined_call_operand.vmem [shape: bf16[128,128], index: 6, kind: input, shape index: {}]
  %s7 = inlined_call_operand.vmem [shape: f32[1,128], index: 7, kind: input, shape index: {}]
  %s8 = inlined_call_operand.vmem [shape: bf16[128,128], index: 8, kind: input, shape index: {}]
  %s9 = inlined_call_operand.vmem [shape: f32[1,128], index: 9, kind: input, shape index: {}]
  %s10 = inlined_call_operand.vmem [shape: f32[64,8], index: 10, kind: output, shape index: {}]
  %s11 = sld [smem:[#allocation0]]
  $region73: #{_lambda_.1} parent=0
    _
  %s13 = ssub.s32 1, %s11
  %s14 = scalar_select 0, %s13, %s11
  loop: start=0, step=1, limit=4
  $region2: #{_lambda_.1} parent=0 // loop_pre_header
    _
  $region3: #{_lambda_.1} parent=0 // loop_header
    %s16 = sphi 0, %s20
    %p17 = scmp.ge.s32.totalorder %s16, 4
    %s26 = sphi 0, %s28
    %s29 = sphi 0, %s26
    %s30 = sphi 0, %s29
    %s46 = sphi 0, %s30
    %s52 = sphi 0, %s54
    %s55 = sphi 0, %s52
    %s56 = sphi 0, %s55
    %s72 = sphi 0, %s56
    %s76 = sphi 0, %s76
    %s78 = sphi 0, %s76
    %s79 = sphi 0, %s78
    %s93 = sphi 0, %s79
    %s97 = sphi 0, %s97
    %s99 = sphi 0, %s97
    %s100 = sphi 0, %s99
    %s114 = sphi 0, %s100
    %s118 = sphi 0, %s118
    %s120 = sphi 0, %s118
    %s121 = sphi 0, %s120
    %s135 = sphi 0, %s121
    %s139 = sphi 0, %s139
    %s141 = sphi 0, %s139
    %s142 = sphi 0, %s141
    %s156 = sphi 0, %s142
    %s160 = sphi 0, %s160
    %s162 = sphi 0, %s160
    %s163 = sphi 0, %s162
    %s177 = sphi 0, %s163
    %s181 = sphi 0, %s181
    %s183 = sphi 0, %s181
    %s184 = sphi 0, %s183
    %s198 = sphi 0, %s184
    %s202 = sphi 0, %s202
    %s204 = sphi 0, %s202
    %s205 = sphi 0, %s204
    %s219 = sphi 0, %s205
    %s223 = sphi 0, %s223
    %s225 = sphi 0, %s223
    %s226 = sphi 0, %s225
    %s240 = sphi 0, %s226
    %s246 = sphi 0, %s248
    %s249 = sphi 0, %s246
    %s250 = sphi 0, %s249
    %s266 = sphi 0, %s250
  $region4: #{_lambda_.1} parent=0 // loop_header_branch
    %19 = sbr.rel (%p17) target = $region8
  $region5: #{_lambda_.1} parent=0 // loop_body
    %s21 = ssub.s32 %s16, 1
    %s22 = ssub.s32 %s16, 2
    %s23 = sadd.s32 %s16, 1
    %s24 = ssub.s32 %s16, %s23
    %p25 = scmp.eq.s32.totalorder %s24, 0
    %s27 = sadd.s32 %s26, 1
    %s28 = scalar_select %p25, %s26, %s27
    %p31 = pneg %p25
    %p32 = scmp.eq.s32.totalorder %s16, 1
    %p33 = por %p31, %p32
    %p34 = scmp.ne.s32.totalorder %s26, %s29
    %p35 = scmp.eq.s32.totalorder %s16, 0
    %p36 = por %p34, %p35
    %p37 = scmp.ne.s32.totalorder %s26, %s29
    %p38 = scmp.eq.s32.totalorder %s21, 1
    %p39 = por %p37, %p38
    %p40 = scmp.ne.s32.totalorder %s29, %s30
    %p41 = scmp.eq.s32.totalorder %s21, 0
    %p42 = por %p40, %p41
    %p43 = scmp.ne.s32.totalorder %s29, %s30
    %p44 = scmp.eq.s32.totalorder %s22, 1
    %p45 = por %p43, %p44
    %p47 = scmp.ne.s32.totalorder %s30, %s46
    %p48 = scmp.eq.s32.totalorder %s22, 0
    %p49 = por %p47, %p48
    %s50 = ssub.s32 %s16, %s23
    %p51 = scmp.eq.s32.totalorder %s50, 0
    %s53 = sadd.s32 %s52, 1
    %s54 = scalar_select %p51, %s52, %s53
    %p57 = pneg %p51
    %p58 = scmp.eq.s32.totalorder %s16, 1
    %p59 = por %p57, %p58
    %p60 = scmp.ne.s32.totalorder %s52, %s55
    %p61 = scmp.eq.s32.totalorder %s16, 0
    %p62 = por %p60, %p61
    %p63 = scmp.ne.s32.totalorder %s52, %s55
    %p64 = scmp.eq.s32.totalorder %s21, 1
    %p65 = por %p63, %p64
    %p66 = scmp.ne.s32.totalorder %s55, %s56
    %p67 = scmp.eq.s32.totalorder %s21, 0
    %p68 = por %p66, %p67
    %p69 = scmp.ne.s32.totalorder %s55, %s56
    %p70 = scmp.eq.s32.totalorder %s22, 1
    %p71 = por %p69, %p70
    %p73 = scmp.ne.s32.totalorder %s56, %s72
    %p74 = scmp.eq.s32.totalorder %s22, 0
    %p75 = por %p73, %p74
    %s77 = sadd.s32 %s76, 1
    %p80 = scmp.eq.s32.totalorder %s16, 1
    %p81 = scmp.ne.s32.totalorder %s76, %s78
    %p82 = scmp.eq.s32.totalorder %s16, 0
    %p83 = por %p81, %p82
    %p84 = scmp.ne.s32.totalorder %s76, %s78
    %p85 = scmp.eq.s32.totalorder %s21, 1
    %p86 = por %p84, %p85
    %p87 = scmp.ne.s32.totalorder %s78, %s79
    %p88 = scmp.eq.s32.totalorder %s21, 0
    %p89 = por %p87, %p88
    %p90 = scmp.ne.s32.totalorder %s78, %s79
    %p91 = scmp.eq.s32.totalorder %s22, 1
    %p92 = por %p90, %p91
    %p94 = scmp.ne.s32.totalorder %s79, %s93
    %p95 = scmp.eq.s32.totalorder %s22, 0
    %p96 = por %p94, %p95
    %s98 = sadd.s32 %s97, 1
    %p101 = scmp.eq.s32.totalorder %s16, 1
    %p102 = scmp.ne.s32.totalorder %s97, %s99
    %p103 = scmp.eq.s32.totalorder %s16, 0
    %p104 = por %p102, %p103
    %p105 = scmp.ne.s32.totalorder %s97, %s99
    %p106 = scmp.eq.s32.totalorder %s21, 1
    %p107 = por %p105, %p106
    %p108 = scmp.ne.s32.totalorder %s99, %s100
    %p109 = scmp.eq.s32.totalorder %s21, 0
    %p110 = por %p108, %p109
    %p111 = scmp.ne.s32.totalorder %s99, %s100
    %p112 = scmp.eq.s32.totalorder %s22, 1
    %p113 = por %p111, %p112
    %p115 = scmp.ne.s32.totalorder %s100, %s114
    %p116 = scmp.eq.s32.totalorder %s22, 0
    %p117 = por %p115, %p116
    %s119 = sadd.s32 %s118, 1
    %p122 = scmp.eq.s32.totalorder %s16, 1
    %p123 = scmp.ne.s32.totalorder %s118, %s120
    %p124 = scmp.eq.s32.totalorder %s16, 0
    %p125 = por %p123, %p124
    %p126 = scmp.ne.s32.totalorder %s118, %s120
    %p127 = scmp.eq.s32.totalorder %s21, 1
    %p128 = por %p126, %p127
    %p129 = scmp.ne.s32.totalorder %s120, %s121
    %p130 = scmp.eq.s32.totalorder %s21, 0
    %p131 = por %p129, %p130
    %p132 = scmp.ne.s32.totalorder %s120, %s121
    %p133 = scmp.eq.s32.totalorder %s22, 1
    %p134 = por %p132, %p133
    %p136 = scmp.ne.s32.totalorder %s121, %s135
    %p137 = scmp.eq.s32.totalorder %s22, 0
    %p138 = por %p136, %p137
    %s140 = sadd.s32 %s139, 1
    %p143 = scmp.eq.s32.totalorder %s16, 1
    %p144 = scmp.ne.s32.totalorder %s139, %s141
    %p145 = scmp.eq.s32.totalorder %s16, 0
    %p146 = por %p144, %p145
    %p147 = scmp.ne.s32.totalorder %s139, %s141
    %p148 = scmp.eq.s32.totalorder %s21, 1
    %p149 = por %p147, %p148
    %p150 = scmp.ne.s32.totalorder %s141, %s142
    %p151 = scmp.eq.s32.totalorder %s21, 0
    %p152 = por %p150, %p151
    %p153 = scmp.ne.s32.totalorder %s141, %s142
    %p154 = scmp.eq.s32.totalorder %s22, 1
    %p155 = por %p153, %p154
    %p157 = scmp.ne.s32.totalorder %s142, %s156
    %p158 = scmp.eq.s32.totalorder %s22, 0
    %p159 = por %p157, %p158
    %s161 = sadd.s32 %s160, 1
    %p164 = scmp.eq.s32.totalorder %s16, 1
    %p165 = scmp.ne.s32.totalorder %s160, %s162
    %p166 = scmp.eq.s32.totalorder %s16, 0
    %p167 = por %p165, %p166
    %p168 = scmp.ne.s32.totalorder %s160, %s162
    %p169 = scmp.eq.s32.totalorder %s21, 1
    %p170 = por %p168, %p169
    %p171 = scmp.ne.s32.totalorder %s162, %s163
    %p172 = scmp.eq.s32.totalorder %s21, 0
    %p173 = por %p171, %p172
    %p174 = scmp.ne.s32.totalorder %s162, %s163
    %p175 = scmp.eq.s32.totalorder %s22, 1
    %p176 = por %p174, %p175
    %p178 = scmp.ne.s32.totalorder %s163, %s177
    %p179 = scmp.eq.s32.totalorder %s22, 0
    %p180 = por %p178, %p179
    %s182 = sadd.s32 %s181, 1
    %p185 = scmp.eq.s32.totalorder %s16, 1
    %p186 = scmp.ne.s32.totalorder %s181, %s183
    %p187 = scmp.eq.s32.totalorder %s16, 0
    %p188 = por %p186, %p187
    %p189 = scmp.ne.s32.totalorder %s181, %s183
    %p190 = scmp.eq.s32.totalorder %s21, 1
    %p191 = por %p189, %p190
    %p192 = scmp.ne.s32.totalorder %s183, %s184
    %p193 = scmp.eq.s32.totalorder %s21, 0
    %p194 = por %p192, %p193
    %p195 = scmp.ne.s32.totalorder %s183, %s184
    %p196 = scmp.eq.s32.totalorder %s22, 1
    %p197 = por %p195, %p196
    %p199 = scmp.ne.s32.totalorder %s184, %s198
    %p200 = scmp.eq.s32.totalorder %s22, 0
    %p201 = por %p199, %p200
    %s203 = sadd.s32 %s202, 1
    %p206 = scmp.eq.s32.totalorder %s16, 1
    %p207 = scmp.ne.s32.totalorder %s202, %s204
    %p208 = scmp.eq.s32.totalorder %s16, 0
    %p209 = por %p207, %p208
    %p210 = scmp.ne.s32.totalorder %s202, %s204
    %p211 = scmp.eq.s32.totalorder %s21, 1
    %p212 = por %p210, %p211
    %p213 = scmp.ne.s32.totalorder %s204, %s205
    %p214 = scmp.eq.s32.totalorder %s21, 0
    %p215 = por %p213, %p214
    %p216 = scmp.ne.s32.totalorder %s204, %s205
    %p217 = scmp.eq.s32.totalorder %s22, 1
    %p218 = por %p216, %p217
    %p220 = scmp.ne.s32.totalorder %s205, %s219
    %p221 = scmp.eq.s32.totalorder %s22, 0
    %p222 = por %p220, %p221
    %s224 = sadd.s32 %s223, 1
    %p227 = scmp.eq.s32.totalorder %s16, 1
    %p228 = scmp.ne.s32.totalorder %s223, %s225
    %p229 = scmp.eq.s32.totalorder %s16, 0
    %p230 = por %p228, %p229
    %p231 = scmp.ne.s32.totalorder %s223, %s225
    %p232 = scmp.eq.s32.totalorder %s21, 1
    %p233 = por %p231, %p232
    %p234 = scmp.ne.s32.totalorder %s225, %s226
    %p235 = scmp.eq.s32.totalorder %s21, 0
    %p236 = por %p234, %p235
    %p237 = scmp.ne.s32.totalorder %s225, %s226
    %p238 = scmp.eq.s32.totalorder %s22, 1
    %p239 = por %p237, %p238
    %p241 = scmp.ne.s32.totalorder %s226, %s240
    %p242 = scmp.eq.s32.totalorder %s22, 0
    %p243 = por %p241, %p242
    %s244 = ssub.s32 %s16, %s23
    %p245 = scmp.eq.s32.totalorder %s244, 0
    %s247 = sadd.s32 %s246, 1
    %s248 = scalar_select %p245, %s246, %s247
    %p251 = pneg %p245
    %p252 = scmp.eq.s32.totalorder %s16, 1
    %p253 = por %p251, %p252
    %p254 = scmp.ne.s32.totalorder %s246, %s249
    %p255 = scmp.eq.s32.totalorder %s16, 0
    %p256 = por %p254, %p255
    %p257 = scmp.ne.s32.totalorder %s246, %s249
    %p258 = scmp.eq.s32.totalorder %s21, 1
    %p259 = por %p257, %p258
    %p260 = scmp.ne.s32.totalorder %s249, %s250
    %p261 = scmp.eq.s32.totalorder %s21, 0
    %p262 = por %p260, %p261
    %p263 = scmp.ne.s32.totalorder %s249, %s250
    %p264 = scmp.eq.s32.totalorder %s22, 1
    %p265 = por %p263, %p264
    %p267 = scmp.ne.s32.totalorder %s250, %s266
    %p268 = scmp.eq.s32.totalorder %s22, 0
    %p269 = por %p267, %p268
    %p270 = scmp.le.s32.totalorder 1, %s16
    %p271 = scmp.lt.s32.totalorder %s16, 3
    %p272 = pnand %p270, %p271
    %p273 = pneg %p272
    // Predicated region
    $region9: #{_lambda_.1} parent=5 // pred_check
      _
    $region10: #{_lambda_.1} parent=5 // pred_check_branch
      %275 = sbr.rel (%p272) target = $region12
    $region11: #{_lambda_.1} parent=5 // pred_region
      %s276 = ssub.s32 %s16, 1
      // Predicated region
      $region13: #{_lambda_.1} parent=11 // pred_check
        %p277 = pneg %p89
      $region14: #{_lambda_.1} parent=11 // pred_check_branch
        %279 = sbr.rel (%p277) target = $region16
      $region15: #{_lambda_.1} parent=11 // pred_region
        _
      $region16: #{_lambda_.1} parent=11 // pred_fallthru
        _
      // Predicated region
      $region17: #{_lambda_.1} parent=11 // pred_check
        %p280 = pneg %p110
      $region18: #{_lambda_.1} parent=11 // pred_check_branch
        %282 = sbr.rel (%p280) target = $region20
      $region19: #{_lambda_.1} parent=11 // pred_region
        _
      $region20: #{_lambda_.1} parent=11 // pred_fallthru
        _
      // Predicated region
      $region21: #{_lambda_.1} parent=11 // pred_check
        %p283 = pneg %p131
      $region22: #{_lambda_.1} parent=11 // pred_check_branch
        %285 = sbr.rel (%p283) target = $region24
      $region23: #{_lambda_.1} parent=11 // pred_region
        _
      $region24: #{_lambda_.1} parent=11 // pred_fallthru
        _
      // Predicated region
      $region25: #{_lambda_.1} parent=11 // pred_check
        %p286 = pneg %p152
      $region26: #{_lambda_.1} parent=11 // pred_check_branch
        %288 = sbr.rel (%p286) target = $region28
      $region27: #{_lambda_.1} parent=11 // pred_region
        _
      $region28: #{_lambda_.1} parent=11 // pred_fallthru
        _
      // Predicated region
      $region29: #{_lambda_.1} parent=11 // pred_check
        %p289 = pneg %p173
      $region30: #{_lambda_.1} parent=11 // pred_check_branch
        %291 = sbr.rel (%p289) target = $region32
      $region31: #{_lambda_.1} parent=11 // pred_region
        _
      $region32: #{_lambda_.1} parent=11 // pred_fallthru
        _
      // Predicated region
      $region33: #{_lambda_.1} parent=11 // pred_check
        %p292 = pneg %p194
      $region34: #{_lambda_.1} parent=11 // pred_check_branch
        %294 = sbr.rel (%p292) target = $region36
      $region35: #{_lambda_.1} parent=11 // pred_region
        _
      $region36: #{_lambda_.1} parent=11 // pred_fallthru
        _
      // Predicated region
      $region37: #{_lambda_.1} parent=11 // pred_check
        %p295 = pneg %p215
      $region38: #{_lambda_.1} parent=11 // pred_check_branch
        %297 = sbr.rel (%p295) target = $region40
      $region39: #{_lambda_.1} parent=11 // pred_region
        _
      $region40: #{_lambda_.1} parent=11 // pred_fallthru
        _
      // Predicated region
      $region41: #{_lambda_.1} parent=11 // pred_check
        %p298 = pneg %p236
      $region42: #{_lambda_.1} parent=11 // pred_check_branch
        %300 = sbr.rel (%p298) target = $region44
      $region43: #{_lambda_.1} parent=11 // pred_region
        _
      $region44: #{_lambda_.1} parent=11 // pred_fallthru
        _
    $region12: #{_lambda_.1} parent=5 // pred_fallthru
      _
    %p301 = scmp.lt.s32.totalorder %s16, 2
    // Predicated region
    $region45: #{_lambda_.1} parent=5 // pred_check
      %p302 = pneg %p301
    $region46: #{_lambda_.1} parent=5 // pred_check_branch
      %304 = sbr.rel (%p302) target = $region48
    $region47: #{_lambda_.1} parent=5 // pred_region
      // Predicated region
      $region49: #{_lambda_.1} parent=47 // pred_check
        %p305 = pneg %p36
      $region50: #{_lambda_.1} parent=47 // pred_check_branch
        %307 = sbr.rel (%p305) target = $region52
      $region51: #{_lambda_.1} parent=47 // pred_region
        %s308 = smul.u32 4, %s16
        %p309 = scmp.lt.s32.totalorder %s308, 7
        %s310 = scalar_select %p309, %s308, 7
        %s311 = smul.addr %s310, 4
        %s312 = scalar_lea.vmem %s0, %s311
        %s313 = smul.u32 4, %s16
      $region52: #{_lambda_.1} parent=47 // pred_fallthru
        _
      // Predicated region
      $region53: #{_lambda_.1} parent=47 // pred_check
        %p314 = pneg %p62
      $region54: #{_lambda_.1} parent=47 // pred_check_branch
        %316 = sbr.rel (%p314) target = $region56
      $region55: #{_lambda_.1} parent=47 // pred_region
        %s317 = smul.u32 4, %s16
        %p318 = scmp.lt.s32.totalorder %s317, 7
        %s319 = scalar_select %p318, %s317, 7
        %s320 = smul.addr %s319, 8
        %s321 = scalar_lea.vmem %s1, %s320
        %s322 = smul.u32 4, %s16
      $region56: #{_lambda_.1} parent=47 // pred_fallthru
        _
    $region48: #{_lambda_.1} parent=5 // pred_fallthru
      _
    %p323 = scmp.le.s32.totalorder 1, %s16
    %p324 = scmp.lt.s32.totalorder %s16, 3
    %p325 = pnand %p323, %p324
    %p326 = pneg %p325
    // Predicated region
    $region57: #{_lambda_.1} parent=5 // pred_check
      _
    $region58: #{_lambda_.1} parent=5 // pred_check_branch
      %328 = sbr.rel (%p325) target = $region60
    $region59: #{_lambda_.1} parent=5 // pred_region
      %s329 = ssub.s32 %s16, 1
      %s330 = smul.u32 4, %s21
      %p331 = scmp.lt.s32.totalorder %s330, 7
      %s332 = scalar_select %p331, %s330, 7
      %s333 = smul.addr %s332, 4
      %s334 = scalar_lea.vmem %s0, %s333
      %p335 = pneg %p42
      %p336 = pneg %p39
      %s337 = smul.u32 4, %s21
      %p338 = scmp.lt.s32.totalorder %s337, 7
      %s339 = scalar_select %p338, %s337, 7
      %s340 = smul.addr %s339, 8
      %s341 = scalar_lea.vmem %s1, %s340
      %p342 = pneg %p68
      %p343 = pneg %p65
      %p344 = pneg %p89
      %p345 = pneg %p86
      %p346 = pneg %p110
      %p347 = pneg %p107
      %p348 = pneg %p131
      %p349 = pneg %p128
      %p350 = pneg %p152
      %p351 = pneg %p149
      %p352 = pneg %p173
      %p353 = pneg %p170
      %p354 = pneg %p194
      %p355 = pneg %p191
      %p356 = pneg %p215
      %p357 = pneg %p212
      %p358 = pneg %p236
      %p359 = pneg %p233
      %p360 = pneg %p262
      %p361 = pneg %p259
      %s362 = smul.u32 4, %s21
      %p363 = scmp.lt.s32.totalorder %s362, 7
      %s364 = scalar_select %p363, %s362, 7
      %s365 = smul.addr %s364, 8
      %s366 = scalar_lea.vmem %s10, %s365
      %s367 = smul.u32 4, %s21
      %p368 = scmp.lt.s32.totalorder %s367, 7
      %s369 = scalar_select %p368, %s367, 7
      %s370 = smul.addr %s369, 4
      %s371 = scalar_lea.vmem %s0, %s370
      %s372 = smul.u32 4, %s21
      %s373 = smul.u32 4, %s21
      %p374 = scmp.lt.s32.totalorder %s373, 7
      %s375 = scalar_select %p374, %s373, 7
      %s376 = smul.addr %s375, 8
      %s377 = scalar_lea.vmem %s1, %s376
      %s378 = smul.u32 4, %s21
      %s379 = smul.u32 4, %s21
      %p380 = scmp.lt.s32.totalorder %s379, 7
      %s381 = scalar_select %p380, %s379, 7
      %s382 = smul.addr %s381, 8
      %s383 = scalar_lea.vmem %s10, %s382
      %s384 = smul.u32 4, %s21
      %v386 = vld [vmem:[%s371] sm:$0xf]
      %v387 = vld [vmem:[%s371 + $0x4] sm:$0xf]
      %v388 = vld [vmem:[%s371 + $0x8] sm:$0xf]
      %v389 = vld [vmem:[%s371 + $0xc] sm:$0xf]
      %v390 = vunpack.c.l.bf16 %v386
      %v391 = vunpack.c.l.bf16 %v387
      %v392 = vunpack.c.l.bf16 %v388
      %v393 = vunpack.c.l.bf16 %v389
      %v394 = vld [vmem:[%s377] sm:$0xff]
      %v395 = vld [vmem:[%s377 + $0x8] sm:$0xff]
      %v396 = vld [vmem:[%s377 + $0x10] sm:$0xff]
      %v397 = vld [vmem:[%s377 + $0x18] sm:$0xff]
      %v398 = vld [vmem:[%s3] sm:$0xff]
      %400 = vset.pattern.permute.xlu0 0
      %401 = vperm.xlu0 %400, %v394
      %v402 = vpop.permute.xlu0 %401
      %405 = vset.pattern.permute.xlu0 0
      %406 = vperm.xlu0 %405, %v395
      %v407 = vpop.permute.xlu0 %406
      %410 = vset.pattern.permute.xlu0 0
      %411 = vperm.xlu0 %410, %v396
      %v412 = vpop.permute.xlu0 %411
      %415 = vset.pattern.permute.xlu0 0
      %416 = vperm.xlu0 %415, %v397
      %v417 = vpop.permute.xlu0 %416
      %v419 = vmul.f32 %v402, %v390
      %v420 = vmul.f32 %v407, %v391
      %v421 = vmul.f32 %v412, %v392
      %v422 = vmul.f32 %v417, %v393
      %v423 = vpack.c.bf16 %v420, %v419
      %v424 = vpack.c.bf16 %v422, %v421
      %v425 = vld [vmem:[%s2] sm:$0xf]
      %v426 = vld [vmem:[%s2 + $0x4] sm:$0xf]
      %v427 = vperm.slane %v398, 0
      %v430 = vunpack.c.l.b16 %v425
      %v431 = vunpack.c.l.b16 %v426
      %v432 = vpack.c.b16 %v431, %v430
      %vm434 = vcmask 130048
      %v436 = vsel %vm434, %v423, 0
      %v439 = vsel %vm434, %v424, 0
      %441 = vmatpush.bf16.msra.mxu0 0
      %442 = vmatpush.bf16.msra.mxu0 0
      %443 = vmatpush.bf16.msra.mxu0 0
      %444 = vmatpush.bf16.msra.mxu0 0
      %445 = vmatpush.bf16.msra.mxu0 0
      %446 = vmatpush.bf16.msra.mxu0 0
      %447 = vmatpush.bf16.msra.mxu0 0
      %448 = vmatpush.bf16.msra.mxu0 %v432
      %449 = vmatmul.bf16.gmra.mxu0 %v436
      %v450 = vpop.f32.mrf.mxu0
      %v451 = vadd.f32 %v427, %v450
      %v452 = vpop.f32.mrf.mxu0
      %v453 = vadd.f32 %v427, %v452
      %454 = vmatmul.bf16.gmra.mxu0 %v439
      %v455 = vpop.f32.mrf.mxu0
      %v456 = vadd.f32 %v427, %v455
      %v457 = vpop.f32.mrf.mxu0
      %v458 = vadd.f32 %v427, %v457
      %459 = vdwg.mxu0
      %v460 = vmax.f32 %v451, 0.0
      %v461 = vmax.f32 %v453, 0.0
      %v462 = vmax.f32 %v456, 0.0
      %v463 = vmax.f32 %v458, 0.0
      %v464 = vperm.slane %v398, 1
      %v465 = vmul.f32 %v460, %v464
      %v466 = vmul.f32 %v461, %v464
      %v467 = vmul.f32 %v462, %v464
      %v468 = vmul.f32 %v463, %v464
      %v469 = vperm.slane %v398, 2
      %v470 = vadd.f32 %v465, %v469
      %v471 = vadd.f32 %v466, %v469
      %v472 = vadd.f32 %v467, %v469
      %v473 = vadd.f32 %v468, %v469
      %v474 = vld [vmem:[%s5] sm:$0xff]
      %v475 = vmul.f32 %v402, %v470
      %v476 = vmul.f32 %v407, %v471
      %v477 = vmul.f32 %v412, %v472
      %v478 = vmul.f32 %v417, %v473
      %v479 = vpack.c.bf16 %v476, %v475
      %v480 = vpack.c.bf16 %v478, %v477
      %v481 = vld [vmem:[%s4] sm:$0xf]
      %v482 = vld [vmem:[%s4 + $0x4] sm:$0xf]
      %v483 = vld [vmem:[%s4 + $0x8] sm:$0xf]
      %v484 = vld [vmem:[%s4 + $0xc] sm:$0xf]
      %v485 = vld [vmem:[%s4 + $0x10] sm:$0xf]
      %v486 = vld [vmem:[%s4 + $0x14] sm:$0xf]
      %v487 = vld [vmem:[%s4 + $0x18] sm:$0xf]
      %v488 = vld [vmem:[%s4 + $0x1c] sm:$0xf]
      %v489 = vld [vmem:[%s4 + $0x20] sm:$0xf]
      %v490 = vld [vmem:[%s4 + $0x24] sm:$0xf]
      %v491 = vld [vmem:[%s4 + $0x28] sm:$0xf]
      %v492 = vld [vmem:[%s4 + $0x2c] sm:$0xf]
      %v493 = vld [vmem:[%s4 + $0x30] sm:$0xf]
      %v494 = vld [vmem:[%s4 + $0x34] sm:$0xf]
      %v495 = vld [vmem:[%s4 + $0x38] sm:$0xf]
      %v496 = vld [vmem:[%s4 + $0x3c] sm:$0xf]
      %v497 = vperm.slane %v474, 0
      %v514 = vunpack.c.l.b16 %v481
      %v515 = vunpack.c.l.b16 %v482
      %v516 = vunpack.c.l.b16 %v483
      %v517 = vunpack.c.l.b16 %v484
      %v518 = vunpack.c.l.b16 %v485
      %v519 = vunpack.c.l.b16 %v486
      %v520 = vunpack.c.l.b16 %v487
      %v521 = vunpack.c.l.b16 %v488
      %v522 = vunpack.c.l.b16 %v489
      %v523 = vunpack.c.l.b16 %v490
      %v524 = vunpack.c.l.b16 %v491
      %v525 = vunpack.c.l.b16 %v492
      %v526 = vunpack.c.l.b16 %v493
      %v527 = vunpack.c.l.b16 %v494
      %v528 = vunpack.c.l.b16 %v495
      %v529 = vunpack.c.l.b16 %v496
      %v530 = vpack.c.b16 %v515, %v514
      %v531 = vpack.c.b16 %v517, %v516
      %v532 = vpack.c.b16 %v519, %v518
      %v533 = vpack.c.b16 %v521, %v520
      %v534 = vpack.c.b16 %v523, %v522
      %v535 = vpack.c.b16 %v525, %v524
      %v536 = vpack.c.b16 %v527, %v526
      %v537 = vpack.c.b16 %v529, %v528
      %546 = vmatpush.bf16.msra.mxu0 %v537
      %547 = vmatpush.bf16.msra.mxu0 %v536
      %548 = vmatpush.bf16.msra.mxu0 %v535
      %549 = vmatpush.bf16.msra.mxu0 %v534
      %550 = vmatpush.bf16.msra.mxu0 %v533
      %551 = vmatpush.bf16.msra.mxu0 %v532
      %552 = vmatpush.bf16.msra.mxu0 %v531
      %553 = vmatpush.bf16.msra.mxu0 %v530
      %554 = vmatmul.bf16.gmra.mxu0 %v479
      %v555 = vpop.f32.mrf.mxu0
      %v556 = vadd.f32 %v497, %v555
      %v557 = vpop.f32.mrf.mxu0
      %v558 = vadd.f32 %v497, %v557
      %559 = vmatmul.bf16.gmra.mxu0 %v480
      %v560 = vpop.f32.mrf.mxu0
      %v561 = vadd.f32 %v497, %v560
      %v562 = vpop.f32.mrf.mxu0
      %v563 = vadd.f32 %v497, %v562
      %564 = vdwg.mxu0
      %v565 = vmax.f32 %v556, 0.0
      %v566 = vmax.f32 %v558, 0.0
      %v567 = vmax.f32 %v561, 0.0
      %v568 = vmax.f32 %v563, 0.0
      %v569 = vperm.slane %v474, 1
      %v570 = vmul.f32 %v565, %v569
      %v571 = vmul.f32 %v566, %v569
      %v572 = vmul.f32 %v567, %v569
      %v573 = vmul.f32 %v568, %v569
      %v574 = vperm.slane %v474, 2
      %v575 = vadd.f32 %v570, %v574
      %v576 = vadd.f32 %v571, %v574
      %v577 = vadd.f32 %v572, %v574
      %v578 = vadd.f32 %v573, %v574
      %v579 = vpack.c.bf16 %v576, %v575
      %v580 = vpack.c.bf16 %v578, %v577
      %v581 = vld [vmem:[%s6] sm:$0xf]
      %v582 = vld [vmem:[%s6 + $0x4] sm:$0xf]
      %v583 = vld [vmem:[%s6 + $0x8] sm:$0xf]
      %v584 = vld [vmem:[%s6 + $0xc] sm:$0xf]
      %v585 = vld [vmem:[%s6 + $0x10] sm:$0xf]
      %v586 = vld [vmem:[%s6 + $0x14] sm:$0xf]
      %v587 = vld [vmem:[%s6 + $0x18] sm:$0xf]
      %v588 = vld [vmem:[%s6 + $0x1c] sm:$0xf]
      %v589 = vld [vmem:[%s6 + $0x20] sm:$0xf]
      %v590 = vld [vmem:[%s6 + $0x24] sm:$0xf]
      %v591 = vld [vmem:[%s6 + $0x28] sm:$0xf]
      %v592 = vld [vmem:[%s6 + $0x2c] sm:$0xf]
      %v593 = vld [vmem:[%s6 + $0x30] sm:$0xf]
      %v594 = vld [vmem:[%s6 + $0x34] sm:$0xf]
      %v595 = vld [vmem:[%s6 + $0x38] sm:$0xf]
      %v596 = vld [vmem:[%s6 + $0x3c] sm:$0xf]
      %v597 = vld [vmem:[%s7] sm:$0x1]
      %v599 = vperm.slane %v597, 0
      %v617 = vunpack.c.l.b16 %v581
      %v618 = vunpack.c.l.b16 %v582
      %v619 = vunpack.c.l.b16 %v583
      %v620 = vunpack.c.l.b16 %v584
      %v621 = vunpack.c.l.b16 %v585
      %v622 = vunpack.c.l.b16 %v586
      %v623 = vunpack.c.l.b16 %v587
      %v624 = vunpack.c.l.b16 %v588
      %v625 = vunpack.c.l.b16 %v589
      %v626 = vunpack.c.l.b16 %v590
      %v627 = vunpack.c.l.b16 %v591
      %v628 = vunpack.c.l.b16 %v592
      %v629 = vunpack.c.l.b16 %v593
      %v630 = vunpack.c.l.b16 %v594
      %v631 = vunpack.c.l.b16 %v595
      %v632 = vunpack.c.l.b16 %v596
      %v633 = vpack.c.b16 %v618, %v617
      %v634 = vpack.c.b16 %v620, %v619
      %v635 = vpack.c.b16 %v622, %v621
      %v636 = vpack.c.b16 %v624, %v623
      %v637 = vpack.c.b16 %v626, %v625
      %v638 = vpack.c.b16 %v628, %v627
      %v639 = vpack.c.b16 %v630, %v629
      %v640 = vpack.c.b16 %v632, %v631
      %649 = vmatpush.bf16.msra.mxu0 %v640
      %650 = vmatpush.bf16.msra.mxu0 %v639
      %651 = vmatpush.bf16.msra.mxu0 %v638
      %652 = vmatpush.bf16.msra.mxu0 %v637
      %653 = vmatpush.bf16.msra.mxu0 %v636
      %654 = vmatpush.bf16.msra.mxu0 %v635
      %655 = vmatpush.bf16.msra.mxu0 %v634
      %656 = vmatpush.bf16.msra.mxu0 %v633
      %657 = vmatmul.bf16.gmra.mxu0 %v579
      %v658 = vpop.f32.mrf.mxu0
      %v659 = vadd.f32 %v599, %v658
      %v660 = vpop.f32.mrf.mxu0
      %v661 = vadd.f32 %v599, %v660
      %662 = vmatmul.bf16.gmra.mxu0 %v580
      %v663 = vpop.f32.mrf.mxu0
      %v664 = vadd.f32 %v599, %v663
      %v665 = vpop.f32.mrf.mxu0
      %v666 = vadd.f32 %v599, %v665
      %667 = vdwg.mxu0
      %v668 = vmax.f32 %v659, 0.0
      %v669 = vmax.f32 %v661, 0.0
      %v670 = vmax.f32 %v664, 0.0
      %v671 = vmax.f32 %v666, 0.0
      %v672 = vpack.c.bf16 %v669, %v668
      %v673 = vpack.c.bf16 %v671, %v670
      %v674 = vld [vmem:[%s8] sm:$0xf]
      %v675 = vld [vmem:[%s8 + $0x4] sm:$0xf]
      %v676 = vld [vmem:[%s8 + $0x8] sm:$0xf]
      %v677 = vld [vmem:[%s8 + $0xc] sm:$0xf]
      %v678 = vld [vmem:[%s8 + $0x10] sm:$0xf]
      %v679 = vld [vmem:[%s8 + $0x14] sm:$0xf]
      %v680 = vld [vmem:[%s8 + $0x18] sm:$0xf]
      %v681 = vld [vmem:[%s8 + $0x1c] sm:$0xf]
      %v682 = vld [vmem:[%s8 + $0x20] sm:$0xf]
      %v683 = vld [vmem:[%s8 + $0x24] sm:$0xf]
      %v684 = vld [vmem:[%s8 + $0x28] sm:$0xf]
      %v685 = vld [vmem:[%s8 + $0x2c] sm:$0xf]
      %v686 = vld [vmem:[%s8 + $0x30] sm:$0xf]
      %v687 = vld [vmem:[%s8 + $0x34] sm:$0xf]
      %v688 = vld [vmem:[%s8 + $0x38] sm:$0xf]
      %v689 = vld [vmem:[%s8 + $0x3c] sm:$0xf]
      %v690 = vld [vmem:[%s9] sm:$0x1]
      %v692 = vperm.slane %v690, 0
      %v710 = vunpack.c.l.b16 %v674
      %v711 = vunpack.c.l.b16 %v675
      %v712 = vunpack.c.l.b16 %v676
      %v713 = vunpack.c.l.b16 %v677
      %v714 = vunpack.c.l.b16 %v678
      %v715 = vunpack.c.l.b16 %v679
      %v716 = vunpack.c.l.b16 %v680
      %v717 = vunpack.c.l.b16 %v681
      %v718 = vunpack.c.l.b16 %v682
      %v719 = vunpack.c.l.b16 %v683
      %v720 = vunpack.c.l.b16 %v684
      %v721 = vunpack.c.l.b16 %v685
      %v722 = vunpack.c.l.b16 %v686
      %v723 = vunpack.c.l.b16 %v687
      %v724 = vunpack.c.l.b16 %v688
      %v725 = vunpack.c.l.b16 %v689
      %v726 = vpack.c.b16 %v711, %v710
      %v727 = vpack.c.b16 %v713, %v712
      %v728 = vpack.c.b16 %v715, %v714
      %v729 = vpack.c.b16 %v717, %v716
      %v730 = vpack.c.b16 %v719, %v718
      %v731 = vpack.c.b16 %v721, %v720
      %v732 = vpack.c.b16 %v723, %v722
      %v733 = vpack.c.b16 %v725, %v724
      %742 = vmatpush.bf16.msra.mxu0 %v733
      %743 = vmatpush.bf16.msra.mxu0 %v732
      %744 = vmatpush.bf16.msra.mxu0 %v731
      %745 = vmatpush.bf16.msra.mxu0 %v730
      %746 = vmatpush.bf16.msra.mxu0 %v729
      %747 = vmatpush.bf16.msra.mxu0 %v728
      %748 = vmatpush.bf16.msra.mxu0 %v727
      %749 = vmatpush.bf16.msra.mxu0 %v726
      %750 = vmatmul.bf16.gmra.mxu0 %v672
      %v751 = vpop.f32.mrf.mxu0
      %v752 = vadd.f32 %v692, %v751
      %v753 = vpop.f32.mrf.mxu0
      %v754 = vadd.f32 %v692, %v753
      %755 = vmatmul.bf16.gmra.mxu0 %v673
      %v756 = vpop.f32.mrf.mxu0
      %v757 = vadd.f32 %v692, %v756
      %v758 = vpop.f32.mrf.mxu0
      %v759 = vadd.f32 %v692, %v758
      %760 = vdwg.mxu0
      %v761 = vmax.f32 %v752, 0.0
      %v762 = vmax.f32 %v754, 0.0
      %v763 = vmax.f32 %v757, 0.0
      %v764 = vmax.f32 %v759, 0.0
      %vm765 = vcmask 64512
      %766 = vst.msk [vmem:[%s383] sm:$0xff] %vm765, %v761
      %767 = vst.msk [vmem:[%s383 + $0x8] sm:$0xff] %vm765, %v762
      %768 = vst.msk [vmem:[%s383 + $0x10] sm:$0xff] %vm765, %v763
      %769 = vst.msk [vmem:[%s383 + $0x18] sm:$0xff] %vm765, %v764
      %s770 = smul.u32 4, %s21
      %p771 = scmp.lt.s32.totalorder %s770, 7
      %s772 = scalar_select %p771, %s770, 7
      %s773 = smul.addr %s772, 8
      %s774 = scalar_lea.vmem %s10, %s773
      // Predicated region
      $region61: #{_lambda_.1} parent=59 // pred_check
        %p775 = pneg %p259
      $region62: #{_lambda_.1} parent=59 // pred_check_branch
        %777 = sbr.rel (%p775) target = $region64
      $region63: #{_lambda_.1} parent=59 // pred_region
        %s778 = smul.u32 4, %s21
      $region64: #{_lambda_.1} parent=59 // pred_fallthru
        _
    $region60: #{_lambda_.1} parent=5 // pred_fallthru
      _
    %p779 = scmp.le.s32.totalorder 2, %s16
    // Predicated region
    $region65: #{_lambda_.1} parent=5 // pred_check
      %p780 = pneg %p779
    $region66: #{_lambda_.1} parent=5 // pred_check_branch
      %782 = sbr.rel (%p780) target = $region68
    $region67: #{_lambda_.1} parent=5 // pred_region
      %s783 = ssub.s32 %s16, 2
      // Predicated region
      $region69: #{_lambda_.1} parent=67 // pred_check
        %p784 = pneg %p265
      $region70: #{_lambda_.1} parent=67 // pred_check_branch
        %786 = sbr.rel (%p784) target = $region72
      $region71: #{_lambda_.1} parent=67 // pred_region
        %s787 = smul.u32 4, %s22
        %p788 = scmp.lt.s32.totalorder %s787, 7
        %s789 = scalar_select %p788, %s787, 7
        %s790 = smul.addr %s789, 8
        %s791 = scalar_lea.vmem %s10, %s790
      $region72: #{_lambda_.1} parent=67 // pred_fallthru
        _
    $region68: #{_lambda_.1} parent=5 // pred_fallthru
      _
  $region6: #{_lambda_.1} parent=0 // loop_footer
    %s20 = sadd.s32 1, %s16
  $region7: #{_lambda_.1} parent=0 // loop_footer_branch
    %15 = sbr.rel target = $region3
  $region8: #{_lambda_.1} parent=0 // loop_exit
    _

</llo_original>
